<compile_context>
chip_gen: v7x
topology: tpu7x:2x2x1
jax: 0.10.0
libtpu: 0.0.40
codegen_flags: <defaults>
</compile_context>

<pallas_src>
from functools import partial

import jax
import jax.numpy as jnp
from jax.experimental import pallas as pl
from jax.experimental.pallas import tpu as pltpu

_NEG_SLOPE = 0.01                      # nn.LeakyReLU() default
_IN_BLOCK_BUDGET = 4 * 1024 * 1024     # target bytes for one input block
_VMEM_LIMIT = 32 * 1024 * 1024         # safe scoped-VMEM cap on v5e/v6e/v7x
_MIN_GRID_STEPS = 4                    # give each TensorCore pipelining depth
_TARGET_LANES = 256                    # fold rows until lane-rows are this wide
_MAX_FOLD = 32                         # bound on per-block unroll factor


def _pool_act_kernel(x_ref, o_ref, *, p, r, W, Wo, neg_slope):
    """Blocks: x_ref (bct, ho_t, r*p*W)  ->  o_ref (bct, ho_t, r*Wo).

    One lane-row of the input packs r*p consecutive image rows (r output
    rows x p pooled-away rows). For every output sub-row t:
      H-window pool = elementwise max of p contiguous lane chunks (VPU),
      W-window pool = reduce over the lane-minor groups of p,
      LeakyReLU     = max(y, slope*y)   (exact for 0 <= slope <= 1),
    then store into the t-th lane segment of the output row.
    """
    x = x_ref[...]
    for t in range(r):
        # --- pool over the H window: max of p contiguous lane chunks -------
        y = x[..., (t * p) * W:(t * p + 1) * W]
        for dh in range(1, p):
            lo = (t * p + dh) * W
            y = jnp.maximum(y, x[..., lo:lo + W])
        # --- pool over the W window: reduce adjacent lane groups of size p -
        if p > 1:
            y = jnp.max(y.reshape(y.shape[0], y.shape[1], Wo, p), axis=-1)
        # --- LeakyReLU ------------------------------------------------------
        y = jnp.maximum(y, neg_slope * y)
        o_ref[:, :, t * Wo:(t + 1) * Wo] = y.astype(o_ref.dtype)


def _pick_fold(Ho, p, W):
    """Fold r consecutive output rows into one lane-row so rows are lane-dense."""
    r = 1
    while (r * p * W < _TARGET_LANES
           and 2 * r <= _MAX_FOLD
           and Ho % (2 * r) == 0):
        r *= 2
    return r


def _pick_ho_tile(Hr, row_bytes, budget, sub_align):
    """Ho tile: full Hr if it fits, else a sub_align-aligned divisor of Hr."""
    if Hr * row_bytes <= budget:
        return Hr
    divs = [d for d in range(sub_align, Hr, sub_align) if Hr % d == 0]
    if not divs:
        return Hr
    fitting = [d for d in divs if d * row_bytes <= budget]
    return max(fitting) if fitting else min(divs)


def _pick_bc_tile(BC, slab_bytes, budget, min_bc_steps):
    """Largest divisor of BC fitting the budget while keeping >= min_bc_steps steps."""
    cap_budget = max(1, budget // max(slab_bytes, 1))
    cap_steps = max(1, BC // max(min_bc_steps, 1))
    t = max(1, min(BC, cap_budget, cap_steps))
    while BC % t:
        t -= 1
    return t


def bottleneck_pool(x, exp, negative_slope=_NEG_SLOPE):
    """BottleneckPool.forward: (B, C, H, W), static int exp -> (B, (H/2^exp)*(W/2^exp), C)."""
    B, C, H, W = x.shape
    exp = int(exp)                       # static: determines output shape
    p = 2 ** exp
    assert H % p == 0 and W % p == 0, "H and W must be divisible by 2**exp"
    Ho, Wo = H // p, W // p
    BC = B * C

    itemsize = x.dtype.itemsize
    r = _pick_fold(Ho, p, W)             # output rows packed per lane-row
    Hr = Ho // r
    L_in, L_out = r * p * W, r * Wo

    # Pure row-major reshape: (B, C, H, W) -> (B*C, Ho/r, r*p*W).  No data movement.
    x3 = x.reshape(BC, Hr, L_in)

    sub_align = max(8, 32 // itemsize)               # sublane tile (f32:8, bf16:16)
    row_bytes = L_in * itemsize
    ho_t = _pick_ho_tile(Hr, row_bytes, _IN_BLOCK_BUDGET, sub_align)
    n_ho_steps = Hr // ho_t
    min_bc_steps = max(1, -(-_MIN_GRID_STEPS // n_ho_steps))   # ceil div
    bct = _pick_bc_tile(BC, ho_t * row_bytes, _IN_BLOCK_BUDGET, min_bc_steps)
    grid = (BC // bct, n_ho_steps)

    out = pl.pallas_call(
        partial(_pool_act_kernel, p=p, r=r, W=W, Wo=Wo, neg_slope=negative_slope),
        out_shape=jax.ShapeDtypeStruct((BC, Hr, L_out), x.dtype),
        grid_spec=pltpu.PrefetchScalarGridSpec(
            num_scalar_prefetch=0,
            grid=grid,
            in_specs=[
                pl.BlockSpec((bct, ho_t, L_in), lambda i, j: (i, j, 0)),
            ],
            out_specs=pl.BlockSpec((bct, ho_t, L_out), lambda i, j: (i, j, 0)),
        ),
        compiler_params=pltpu.CompilerParams(
            dimension_semantics=("parallel", "parallel"),
            vmem_limit_bytes=_VMEM_LIMIT,
        ),
    )(x3)

    # rearrange 'b c h w -> b (h w) c' on the pooled (p*p-smaller) tensor.
    # TODO(synk): the channel-last transpose stays in XLA; fusing it would need
    # an in-kernel cross-lane transpose of the pooled tile.
    return jnp.transpose(out.reshape(B, C, Ho * Wo), (0, 2, 1))


def _reference(x, exp, negative_slope=_NEG_SLOPE):
    B, C, H, W = x.shape
    p = 2 ** int(exp)
    Ho, Wo = H // p, W // p
    y = jnp.max(x.reshape(B, C, Ho, p, Wo, p), axis=(3, 5))
    y = jnp.where(y >= 0, y, negative_slope * y)
    return jnp.transpose(y.reshape(B, C, Ho * Wo), (0, 2, 1))


if __name__ == "__main__":
    # Small shapes consistent with the module: B=2, C=4 (dim), 16x16 spatial.
    # BottleneckPool has no learnable parameters (MaxPool2d / LeakyReLU are
    # parameter-free).
    B, C, H, W = 2, 4, 16, 16
    key = jax.random.PRNGKey(0)
    x = jax.random.normal(key, (B, C, H, W), dtype=jnp.float32)

    for exp in (1, 2):                      # one and two 2x2 pooling rounds
        out = jax.block_until_ready(bottleneck_pool(x, exp))
        ref = _reference(x, exp)
        p = 2 ** exp
        assert out.shape == (B, (H // p) * (W // p), C), out.shape
        assert jnp.allclose(out, ref, atol=1e-6, rtol=1e-6), f"mismatch exp={exp}"

    print("KERNEL_OK")
</pallas_src>

<mosaic_0001>
module attributes {stable_mosaic.version = 11 : i64} {
  func.func @_pool_act_kernel(%arg0: i32, %arg1: i32, %arg2: memref<2x1x256xf32, #tpu.memory_space<vmem>>, %arg3: memref<2x1x64xf32, #tpu.memory_space<vmem>>) attributes {dimension_semantics = [#tpu.dimension_semantics<parallel>, #tpu.dimension_semantics<parallel>], iteration_bounds = array<i64: 4, 1>, scalar_prefetch = 0 : i64, scratch_operands = 0 : i64, tpu.core_type = #tpu.core_type<tc>, window_params = [{transform_indices = @transform_0, window_bounds = array<i64: 2, 1, 256>}, {transform_indices = @transform_1, window_bounds = array<i64: 2, 1, 64>}]} {
    %c0 = arith.constant 0 : index
    %c0_0 = arith.constant 0 : index
    %c0_1 = arith.constant 0 : index
    %0 = vector.load %arg2[%c0, %c0_0, %c0_1] : memref<2x1x256xf32, #tpu.memory_space<vmem>>, vector<2x1x256xf32>
    %1 = vector.extract_strided_slice %0 {offsets = [0, 0, 0], sizes = [2, 1, 16], strides = [1, 1, 1]} : vector<2x1x256xf32> to vector<2x1x16xf32>
    %2 = vector.extract_strided_slice %0 {offsets = [0, 0, 16], sizes = [2, 1, 16], strides = [1, 1, 1]} : vector<2x1x256xf32> to vector<2x1x16xf32>
    %3 = arith.maximumf %1, %2 : vector<2x1x16xf32>
    %4 = vector.shape_cast %3 : vector<2x1x16xf32> to vector<2x1x8x2xf32>
    %cst = arith.constant dense<0xFF800000> : vector<2x1x8xf32>
    %5 = vector.multi_reduction <maximumf>, %4, %cst [3] : vector<2x1x8x2xf32> to vector<2x1x8xf32>
    %cst_2 = arith.constant 0.00999999977 : f32
    %6 = vector.broadcast %cst_2 : f32 to vector<2x1x8xf32>
    %7 = arith.mulf %6, %5 : vector<2x1x8xf32>
    %8 = arith.maximumf %5, %7 : vector<2x1x8xf32>
    %c0_3 = arith.constant 0 : index
    %c0_4 = arith.constant 0 : index
    %c0_5 = arith.constant 0 : index
    %9 = vector.load %arg3[%c0_3, %c0_4, %c0_5] : memref<2x1x64xf32, #tpu.memory_space<vmem>>, vector<2x1x8xf32>
    tpu.vector_store %arg3[%c0_3, %c0_4, %c0_5], %8 {strides = array<i32>} : memref<2x1x64xf32, #tpu.memory_space<vmem>>, vector<2x1x8xf32>,
    %10 = vector.extract_strided_slice %0 {offsets = [0, 0, 32], sizes = [2, 1, 16], strides = [1, 1, 1]} : vector<2x1x256xf32> to vector<2x1x16xf32>
    %11 = vector.extract_strided_slice %0 {offsets = [0, 0, 48], sizes = [2, 1, 16], strides = [1, 1, 1]} : vector<2x1x256xf32> to vector<2x1x16xf32>
    %12 = arith.maximumf %10, %11 : vector<2x1x16xf32>
    %13 = vector.shape_cast %12 : vector<2x1x16xf32> to vector<2x1x8x2xf32>
    %cst_6 = arith.constant dense<0xFF800000> : vector<2x1x8xf32>
    %14 = vector.multi_reduction <maximumf>, %13, %cst_6 [3] : vector<2x1x8x2xf32> to vector<2x1x8xf32>
    %cst_7 = arith.constant 0.00999999977 : f32
    %15 = vector.broadcast %cst_7 : f32 to vector<2x1x8xf32>
    %16 = arith.mulf %15, %14 : vector<2x1x8xf32>
    %17 = arith.maximumf %14, %16 : vector<2x1x8xf32>
    %c0_8 = arith.constant 0 : index
    %c0_9 = arith.constant 0 : index
    %c8 = arith.constant 8 : index
    %18 = vector.load %arg3[%c0_8, %c0_9, %c8] : memref<2x1x64xf32, #tpu.memory_space<vmem>>, vector<2x1x8xf32>
    tpu.vector_store %arg3[%c0_8, %c0_9, %c8], %17 {strides = array<i32>} : memref<2x1x64xf32, #tpu.memory_space<vmem>>, vector<2x1x8xf32>,
    %19 = vector.extract_strided_slice %0 {offsets = [0, 0, 64], sizes = [2, 1, 16], strides = [1, 1, 1]} : vector<2x1x256xf32> to vector<2x1x16xf32>
    %20 = vector.extract_strided_slice %0 {offsets = [0, 0, 80], sizes = [2, 1, 16], strides = [1, 1, 1]} : vector<2x1x256xf32> to vector<2x1x16xf32>
    %21 = arith.maximumf %19, %20 : vector<2x1x16xf32>
    %22 = vector.shape_cast %21 : vector<2x1x16xf32> to vector<2x1x8x2xf32>
    %cst_10 = arith.constant dense<0xFF800000> : vector<2x1x8xf32>
    %23 = vector.multi_reduction <maximumf>, %22, %cst_10 [3] : vector<2x1x8x2xf32> to vector<2x1x8xf32>
    %cst_11 = arith.constant 0.00999999977 : f32
    %24 = vector.broadcast %cst_11 : f32 to vector<2x1x8xf32>
    %25 = arith.mulf %24, %23 : vector<2x1x8xf32>
    %26 = arith.maximumf %23, %25 : vector<2x1x8xf32>
    %c0_12 = arith.constant 0 : index
    %c0_13 = arith.constant 0 : index
    %c16 = arith.constant 16 : index
    %27 = vector.load %arg3[%c0_12, %c0_13, %c16] : memref<2x1x64xf32, #tpu.memory_space<vmem>>, vector<2x1x8xf32>
    tpu.vector_store %arg3[%c0_12, %c0_13, %c16], %26 {strides = array<i32>} : memref<2x1x64xf32, #tpu.memory_space<vmem>>, vector<2x1x8xf32>,
    %28 = vector.extract_strided_slice %0 {offsets = [0, 0, 96], sizes = [2, 1, 16], strides = [1, 1, 1]} : vector<2x1x256xf32> to vector<2x1x16xf32>
    %29 = vector.extract_strided_slice %0 {offsets = [0, 0, 112], sizes = [2, 1, 16], strides = [1, 1, 1]} : vector<2x1x256xf32> to vector<2x1x16xf32>
    %30 = arith.maximumf %28, %29 : vector<2x1x16xf32>
    %31 = vector.shape_cast %30 : vector<2x1x16xf32> to vector<2x1x8x2xf32>
    %cst_14 = arith.constant dense<0xFF800000> : vector<2x1x8xf32>
    %32 = vector.multi_reduction <maximumf>, %31, %cst_14 [3] : vector<2x1x8x2xf32> to vector<2x1x8xf32>
    %cst_15 = arith.constant 0.00999999977 : f32
    %33 = vector.broadcast %cst_15 : f32 to vector<2x1x8xf32>
    %34 = arith.mulf %33, %32 : vector<2x1x8xf32>
    %35 = arith.maximumf %32, %34 : vector<2x1x8xf32>
    %c0_16 = arith.constant 0 : index
    %c0_17 = arith.constant 0 : index
    %c24 = arith.constant 24 : index
    %36 = vector.load %arg3[%c0_16, %c0_17, %c24] : memref<2x1x64xf32, #tpu.memory_space<vmem>>, vector<2x1x8xf32>
    tpu.vector_store %arg3[%c0_16, %c0_17, %c24], %35 {strides = array<i32>} : memref<2x1x64xf32, #tpu.memory_space<vmem>>, vector<2x1x8xf32>,
    %37 = vector.extract_strided_slice %0 {offsets = [0, 0, 128], sizes = [2, 1, 16], strides = [1, 1, 1]} : vector<2x1x256xf32> to vector<2x1x16xf32>
    %38 = vector.extract_strided_slice %0 {offsets = [0, 0, 144], sizes = [2, 1, 16], strides = [1, 1, 1]} : vector<2x1x256xf32> to vector<2x1x16xf32>
    %39 = arith.maximumf %37, %38 : vector<2x1x16xf32>
    %40 = vector.shape_cast %39 : vector<2x1x16xf32> to vector<2x1x8x2xf32>
    %cst_18 = arith.constant dense<0xFF800000> : vector<2x1x8xf32>
    %41 = vector.multi_reduction <maximumf>, %40, %cst_18 [3] : vector<2x1x8x2xf32> to vector<2x1x8xf32>
    %cst_19 = arith.constant 0.00999999977 : f32
    %42 = vector.broadcast %cst_19 : f32 to vector<2x1x8xf32>
    %43 = arith.mulf %42, %41 : vector<2x1x8xf32>
    %44 = arith.maximumf %41, %43 : vector<2x1x8xf32>
    %c0_20 = arith.constant 0 : index
    %c0_21 = arith.constant 0 : index
    %c32 = arith.constant 32 : index
    %45 = vector.load %arg3[%c0_20, %c0_21, %c32] : memref<2x1x64xf32, #tpu.memory_space<vmem>>, vector<2x1x8xf32>
    tpu.vector_store %arg3[%c0_20, %c0_21, %c32], %44 {strides = array<i32>} : memref<2x1x64xf32, #tpu.memory_space<vmem>>, vector<2x1x8xf32>,
    %46 = vector.extract_strided_slice %0 {offsets = [0, 0, 160], sizes = [2, 1, 16], strides = [1, 1, 1]} : vector<2x1x256xf32> to vector<2x1x16xf32>
    %47 = vector.extract_strided_slice %0 {offsets = [0, 0, 176], sizes = [2, 1, 16], strides = [1, 1, 1]} : vector<2x1x256xf32> to vector<2x1x16xf32>
    %48 = arith.maximumf %46, %47 : vector<2x1x16xf32>
    %49 = vector.shape_cast %48 : vector<2x1x16xf32> to vector<2x1x8x2xf32>
    %cst_22 = arith.constant dense<0xFF800000> : vector<2x1x8xf32>
    %50 = vector.multi_reduction <maximumf>, %49, %cst_22 [3] : vector<2x1x8x2xf32> to vector<2x1x8xf32>
    %cst_23 = arith.constant 0.00999999977 : f32
    %51 = vector.broadcast %cst_23 : f32 to vector<2x1x8xf32>
    %52 = arith.mulf %51, %50 : vector<2x1x8xf32>
    %53 = arith.maximumf %50, %52 : vector<2x1x8xf32>
    %c0_24 = arith.constant 0 : index
    %c0_25 = arith.constant 0 : index
    %c40 = arith.constant 40 : index
    %54 = vector.load %arg3[%c0_24, %c0_25, %c40] : memref<2x1x64xf32, #tpu.memory_space<vmem>>, vector<2x1x8xf32>
    tpu.vector_store %arg3[%c0_24, %c0_25, %c40], %53 {strides = array<i32>} : memref<2x1x64xf32, #tpu.memory_space<vmem>>, vector<2x1x8xf32>,
    %55 = vector.extract_strided_slice %0 {offsets = [0, 0, 192], sizes = [2, 1, 16], strides = [1, 1, 1]} : vector<2x1x256xf32> to vector<2x1x16xf32>
    %56 = vector.extract_strided_slice %0 {offsets = [0, 0, 208], sizes = [2, 1, 16], strides = [1, 1, 1]} : vector<2x1x256xf32> to vector<2x1x16xf32>
    %57 = arith.maximumf %55, %56 : vector<2x1x16xf32>
    %58 = vector.shape_cast %57 : vector<2x1x16xf32> to vector<2x1x8x2xf32>
    %cst_26 = arith.constant dense<0xFF800000> : vector<2x1x8xf32>
    %59 = vector.multi_reduction <maximumf>, %58, %cst_26 [3] : vector<2x1x8x2xf32> to vector<2x1x8xf32>
    %cst_27 = arith.constant 0.00999999977 : f32
    %60 = vector.broadcast %cst_27 : f32 to vector<2x1x8xf32>
    %61 = arith.mulf %60, %59 : vector<2x1x8xf32>
    %62 = arith.maximumf %59, %61 : vector<2x1x8xf32>
    %c0_28 = arith.constant 0 : index
    %c0_29 = arith.constant 0 : index
    %c48 = arith.constant 48 : index
    %63 = vector.load %arg3[%c0_28, %c0_29, %c48] : memref<2x1x64xf32, #tpu.memory_space<vmem>>, vector<2x1x8xf32>
    tpu.vector_store %arg3[%c0_28, %c0_29, %c48], %62 {strides = array<i32>} : memref<2x1x64xf32, #tpu.memory_space<vmem>>, vector<2x1x8xf32>,
    %64 = vector.extract_strided_slice %0 {offsets = [0, 0, 224], sizes = [2, 1, 16], strides = [1, 1, 1]} : vector<2x1x256xf32> to vector<2x1x16xf32>
    %65 = vector.extract_strided_slice %0 {offsets = [0, 0, 240], sizes = [2, 1, 16], strides = [1, 1, 1]} : vector<2x1x256xf32> to vector<2x1x16xf32>
    %66 = arith.maximumf %64, %65 : vector<2x1x16xf32>
    %67 = vector.shape_cast %66 : vector<2x1x16xf32> to vector<2x1x8x2xf32>
    %cst_30 = arith.constant dense<0xFF800000> : vector<2x1x8xf32>
    %68 = vector.multi_reduction <maximumf>, %67, %cst_30 [3] : vector<2x1x8x2xf32> to vector<2x1x8xf32>
    %cst_31 = arith.constant 0.00999999977 : f32
    %69 = vector.broadcast %cst_31 : f32 to vector<2x1x8xf32>
    %70 = arith.mulf %69, %68 : vector<2x1x8xf32>
    %71 = arith.maximumf %68, %70 : vector<2x1x8xf32>
    %c0_32 = arith.constant 0 : index
    %c0_33 = arith.constant 0 : index
    %c56 = arith.constant 56 : index
    %72 = vector.load %arg3[%c0_32, %c0_33, %c56] : memref<2x1x64xf32, #tpu.memory_space<vmem>>, vector<2x1x8xf32>
    tpu.vector_store %arg3[%c0_32, %c0_33, %c56], %71 {strides = array<i32>} : memref<2x1x64xf32, #tpu.memory_space<vmem>>, vector<2x1x8xf32>,
    return
  }
  func.func @transform_0(%arg0: i32, %arg1: i32) -> (i32, i32, i32) {
    %c0_i32 = arith.constant 0 : i32
    %c0_i32_0 = arith.constant 0 : i32
    return %arg0, %arg1, %c0_i32 : i32, i32, i32
  }
  func.func @transform_1(%arg0: i32, %arg1: i32) -> (i32, i32, i32) {
    %c0_i32 = arith.constant 0 : i32
    %c0_i32_0 = arith.constant 0 : i32
    return %arg0, %arg1, %c0_i32 : i32, i32, i32
  }
}

</mosaic_0001>

<llo_original>
// kernel: tpu_custom_call.1
$region0: #{tpu_custom_call.1}
  #allocation0 [shape = 'u32[]', space=smem, size = 0x4, offset = 0x4, fixed_abs, tag = 'smem constant byte address 0x4 - core index']
  #allocation1 [shape = 'u32[144,128]{1,0:T(1,128)}', space=vmem, size = 0x12000, scoped, tag = 'internal scratch']
  %s0 = inlined_call_operand.hbm [shape: f32[8,1,256], index: 0, kind: input, shape index: {}]
  %s1 = inlined_call_operand.hbm [shape: f32[8,1,64], index: 1, kind: output, shape index: {}]
  %s2 = sld [smem:[#allocation0]]
  $region41: #{tpu_custom_call.1} parent=0
    _
  %s4 = ssub.s32 1, %s2
  %s5 = scalar_select 0, %s4, %s2
  $region1: #{tpu_custom_call.1} parent=0
    #allocation2 [shape = 'u8[4096]{0}', space=vmem, size = 0x1000, scoped, tag = 'input window, operand 0']
    #allocation3 [shape = 's32[2]{0}', space=sflag, size = 0x8, scoped, tag = 'scoped memory for tpu_custom_call.1']
    #allocation4 [shape = 's32[2]{0}', space=sflag, size = 0x8, scoped, tag = 'scoped memory for tpu_custom_call.1']
    #allocation5 [shape = 'u8[2048]{0}', space=vmem, size = 0x800, scoped, tag = 'output window, operand 0']
    %6 = vsyncpa [#allocation3], 0
    %s7 = scalar_lea.sflag [#allocation3], 1
    %8 = vsyncpa %s7, 0
    %9 = vsyncpa [#allocation4], 0
    %s10 = scalar_lea.sflag [#allocation4], 1
    %11 = vsyncpa %s10, 0
    loop: start=0, step=1, limit=6
    $region2: #{tpu_custom_call.1} parent=1 // loop_pre_header
      _
    $region3: #{tpu_custom_call.1} parent=1 // loop_header
      %s13 = sphi 0, %s17
      %p14 = scmp.ge.s32.totalorder %s13, 6
      %s20 = sphi 0, %s32
      %s21 = sphi 0, %s28
      %s22 = sphi 0, %s20
      %s23 = sphi 0, %s21
      %s24 = sphi 0, %s22
      %s25 = sphi 0, %s23
      %s37 = sphi 0, %s39
      %s40 = sphi 0, %s37
      %s41 = sphi 0, %s40
      %s57 = sphi 0, %s41
      %s65 = sphi 0, %s67
      %s68 = sphi 0, %s65
      %s69 = sphi 0, %s68
      %s85 = sphi 0, %s69
    $region4: #{tpu_custom_call.1} parent=1 // loop_header_branch
      %16 = sbr.rel (%p14) target = $region8
    $region5: #{tpu_custom_call.1} parent=1 // loop_body
      %s18 = ssub.s32 %s13, 1
      %s19 = ssub.s32 %s13, 2
      %s26 = sadd.s32 1, %s21
      %p27 = scmp.ge.s32.totalorder %s26, 1
      %s28 = scalar_select %p27, 0, %s26
      %s29 = sadd.s32 1, %s20
      %s30 = scalar_select %p27, %s29, %s20
      %p31 = scmp.ge.s32.totalorder %s30, 4
      %s32 = scalar_select %p31, 0, %s30
      %s33 = ssub.s32 %s20, %s32
      %s34 = ssub.s32 %s21, %s28
      %s35 = sor.u32 %s33, %s34
      %p36 = scmp.eq.s32.totalorder %s35, 0
      %s38 = sadd.s32 %s37, 1
      %s39 = scalar_select %p36, %s37, %s38
      %p42 = pneg %p36
      %p43 = scmp.eq.s32.totalorder %s13, 3
      %p44 = por %p42, %p43
      %p45 = scmp.ne.s32.totalorder %s37, %s40
      %p46 = scmp.eq.s32.totalorder %s13, 0
      %p47 = por %p45, %p46
      %p48 = scmp.ne.s32.totalorder %s37, %s40
      %p49 = scmp.eq.s32.totalorder %s18, 3
      %p50 = por %p48, %p49
      %p51 = scmp.ne.s32.totalorder %s40, %s41
      %p52 = scmp.eq.s32.totalorder %s18, 0
      %p53 = por %p51, %p52
      %p54 = scmp.ne.s32.totalorder %s40, %s41
      %p55 = scmp.eq.s32.totalorder %s19, 3
      %p56 = por %p54, %p55
      %p58 = scmp.ne.s32.totalorder %s41, %s57
      %p59 = scmp.eq.s32.totalorder %s19, 0
      %p60 = por %p58, %p59
      %s61 = ssub.s32 %s20, %s32
      %s62 = ssub.s32 %s21, %s28
      %s63 = sor.u32 %s61, %s62
      %p64 = scmp.eq.s32.totalorder %s63, 0
      %s66 = sadd.s32 %s65, 1
      %s67 = scalar_select %p64, %s65, %s66
      %p70 = pneg %p64
      %p71 = scmp.eq.s32.totalorder %s13, 3
      %p72 = por %p70, %p71
      %p73 = scmp.ne.s32.totalorder %s65, %s68
      %p74 = scmp.eq.s32.totalorder %s13, 0
      %p75 = por %p73, %p74
      %p76 = scmp.ne.s32.totalorder %s65, %s68
      %p77 = scmp.eq.s32.totalorder %s18, 3
      %p78 = por %p76, %p77
      %p79 = scmp.ne.s32.totalorder %s68, %s69
      %p80 = scmp.eq.s32.totalorder %s18, 0
      %p81 = por %p79, %p80
      %p82 = scmp.ne.s32.totalorder %s68, %s69
      %p83 = scmp.eq.s32.totalorder %s19, 3
      %p84 = por %p82, %p83
      %p86 = scmp.ne.s32.totalorder %s69, %s85
      %p87 = scmp.eq.s32.totalorder %s19, 0
      %p88 = por %p86, %p87
      %p89 = scmp.le.s32.totalorder 1, %s13
      %p90 = scmp.lt.s32.totalorder %s13, 5
      %p91 = pnand %p89, %p90
      %p92 = pneg %p91
      // Predicated region
      $region9: #{tpu_custom_call.1} parent=5 // pred_check
        _
      $region10: #{tpu_custom_call.1} parent=5 // pred_check_branch
        %94 = sbr.rel (%p91) target = $region12
      $region11: #{tpu_custom_call.1} parent=5 // pred_region
        %s95 = ssub.s32 %s13, 1
      $region12: #{tpu_custom_call.1} parent=5 // pred_fallthru
        _
      %p96 = scmp.lt.s32.totalorder %s13, 4
      // Predicated region
      $region13: #{tpu_custom_call.1} parent=5 // pred_check
        %p97 = pneg %p96
      $region14: #{tpu_custom_call.1} parent=5 // pred_check_branch
        %99 = sbr.rel (%p97) target = $region16
      $region15: #{tpu_custom_call.1} parent=5 // pred_region
        // Predicated region
        $region17: #{tpu_custom_call.1} parent=15 // pred_check
          %p100 = pneg %p47
        $region18: #{tpu_custom_call.1} parent=15 // pred_check_branch
          %102 = sbr.rel (%p100) target = $region20
        $region19: #{tpu_custom_call.1} parent=15 // pred_region
          %s103 = sand.u32 %s37, 1
          %s104 = scalar_lea.sflag [#allocation3], %s103
          %s105 = sand.u32 %s37, 1
          %s106 = smul.addr %s105, 4
          %s107 = scalar_lea.vmem [#allocation2], %s106
          %s108 = smul.u32 2, %s20
          %s110 = ssub.s32 64, 64
          %111 = vsyncadd %s104, %s110
          %s112 = smul.addr %s21, 2
          %s113 = smul.addr %s108, 2
          %s114 = sadd.s32 %s112, %s113
          %s115 = smul.addr %s114, 16
          %s116 = scalar_lea.hbm %s0, %s115
          %s117 = sshll.u32 %s107, 4
          %s118 = int_to_ptr.vmem [resolvable:$true] %s117
          %123 = dma.hbm_to_vmem [thread:$0]  %s116, 64, %s118, %s104, 32, 32, 2
        $region20: #{tpu_custom_call.1} parent=15 // pred_fallthru
          _
      $region16: #{tpu_custom_call.1} parent=5 // pred_fallthru
        _
      %p124 = scmp.le.s32.totalorder 1, %s13
      %p125 = scmp.lt.s32.totalorder %s13, 5
      %p126 = pnand %p124, %p125
      %p127 = pneg %p126
      // Predicated region
      $region21: #{tpu_custom_call.1} parent=5 // pred_check
        _
      $region22: #{tpu_custom_call.1} parent=5 // pred_check_branch
        %129 = sbr.rel (%p126) target = $region24
      $region23: #{tpu_custom_call.1} parent=5 // pred_region
        %s130 = ssub.s32 %s13, 1
        %s131 = sand.u32 %s40, 1
        %s132 = scalar_lea.sflag [#allocation3], %s131
        %s133 = sand.u32 %s40, 1
        %s134 = smul.addr %s133, 4
        %s135 = scalar_lea.vmem [#allocation2], %s134
        // Predicated region
        $region25: #{tpu_custom_call.1} parent=23 // pred_check
          %p136 = pneg %p53
        $region26: #{tpu_custom_call.1} parent=23 // pred_check_branch
          %138 = sbr.rel (%p136) target = $region28
        $region27: #{tpu_custom_call.1} parent=23 // pred_region
          %139 = dma.done %s132, 64
        $region28: #{tpu_custom_call.1} parent=23 // pred_fallthru
          _
        %s140 = sand.u32 %s40, 1
        %s141 = scalar_lea.sflag [#allocation3], %s140
        %s142 = sand.u32 %s40, 1
        %s143 = smul.addr %s142, 4
        %s144 = scalar_lea.vmem [#allocation2], %s143
        %p145 = pneg %p53
        %p146 = pneg %p50
        %p147 = pneg %p81
        %p148 = pneg %p78
        %s149 = sand.u32 %s68, 1
        %s150 = scalar_lea.sflag [#allocation4], %s149
        %s151 = sand.u32 %s68, 1
        %s152 = smul.addr %s151, 2
        %s153 = scalar_lea.vmem [#allocation5], %s152
        %s154 = smul.u32 2, %s22
        %s155 = smul.u32 2, %s22
        %v156 = vld [vmem:[%s135] sm:$0x3]
        %v157 = vld [vmem:[%s135 + $0x2] sm:$0x3]
        %160 = vrot.lane.b32.xlu0 %v156, 112
        %v161 = vpop.permute.xlu0 %160
        %162 = vrot.lane.b32.xlu0 %v157, 112
        %v163 = vpop.permute.xlu0 %162
        %v166 = vmax.f32 %v156, %v161
        %v167 = vmax.f32 %v157, %v163
        %170 = vrot.lane.b32.xlu0 %v166, 126
        %v171 = vpop.permute.xlu0 %170
        %172 = vrot.lane.b32.xlu0 %v167, 126
        %v173 = vpop.permute.xlu0 %172
        %174 = vrot.lane.b32.xlu0 %v166, 124
        %v175 = vpop.permute.xlu0 %174
        %176 = vrot.lane.b32.xlu0 %v167, 124
        %v177 = vpop.permute.xlu0 %176
        %178 = vrot.lane.b32.xlu0 %v166, 122
        %v179 = vpop.permute.xlu0 %178
        %180 = vrot.lane.b32.xlu0 %v167, 122
        %v181 = vpop.permute.xlu0 %180
        %182 = vrot.lane.b32.xlu0 %v166, 120
        %v183 = vpop.permute.xlu0 %182
        %184 = vrot.lane.b32.xlu0 %v167, 120
        %v185 = vpop.permute.xlu0 %184
        %186 = vrot.lane.b32.xlu0 %v166, 118
        %v187 = vpop.permute.xlu0 %186
        %188 = vrot.lane.b32.xlu0 %v167, 118
        %v189 = vpop.permute.xlu0 %188
        %190 = vrot.lane.b32.xlu0 %v166, 116
        %v191 = vpop.permute.xlu0 %190
        %192 = vrot.lane.b32.xlu0 %v167, 116
        %v193 = vpop.permute.xlu0 %192
        %194 = vrot.lane.b32.xlu0 %v166, 114
        %v195 = vpop.permute.xlu0 %194
        %196 = vrot.lane.b32.xlu0 %v167, 114
        %v197 = vpop.permute.xlu0 %196
        %v198 = vcombine.low %v166, %v171
        %v199 = vcombine.low %v175, %v179
        %v200 = vcombine.low %v183, %v187
        %v201 = vcombine.low %v191, %v195
        %v203 = vunpack.c.l.s4 1966171168
        %v204 = vunpack.c.0.s8 %v203
        %v205 = vlaneseq
        %v206 = vshrl.u32 %v205, 7
        %v207 = vsub.s32 %v204, %v206
        %v208 = vrot.slane %v198, %v207
        %v210 = vunpack.c.l.s4 1966171168
        %v211 = vunpack.c.0.s8 %v210
        %v212 = vlaneseq
        %v213 = vshrl.u32 %v212, 7
        %v214 = vsub.s32 %v211, %v213
        %v215 = vrot.slane %v199, %v214
        %v217 = vunpack.c.l.s4 1966171168
        %v218 = vunpack.c.0.s8 %v217
        %v219 = vlaneseq
        %v220 = vshrl.u32 %v219, 7
        %v221 = vsub.s32 %v218, %v220
        %v222 = vrot.slane %v200, %v221
        %v224 = vunpack.c.l.s4 1966171168
        %v225 = vunpack.c.0.s8 %v224
        %v226 = vlaneseq
        %v227 = vshrl.u32 %v226, 7
        %v228 = vsub.s32 %v225, %v227
        %v229 = vrot.slane %v201, %v228
        %v230 = vcombine.low %v208, %v215
        %v231 = vcombine.low %v222, %v229
        %v233 = vunpack.c.l.s4 1966171168
        %v234 = vunpack.c.0.s8 %v233
        %v235 = vlaneseq
        %v236 = vshrl.u32 %v235, 7
        %v237 = vsub.s32 %v234, %v236
        %v238 = vrot.slane %v230, %v237
        %v240 = vunpack.c.l.s4 1966171168
        %v241 = vunpack.c.0.s8 %v240
        %v242 = vlaneseq
        %v243 = vshrl.u32 %v242, 7
        %v244 = vsub.s32 %v241, %v243
        %v245 = vrot.slane %v231, %v244
        %v246 = vcombine.low %v238, %v245
        %v247 = vcombine.low %v167, %v173
        %v248 = vcombine.low %v177, %v181
        %v249 = vcombine.low %v185, %v189
        %v250 = vcombine.low %v193, %v197
        %v252 = vunpack.c.l.s4 1966171168
        %v253 = vunpack.c.0.s8 %v252
        %v254 = vlaneseq
        %v255 = vshrl.u32 %v254, 7
        %v256 = vsub.s32 %v253, %v255
        %v257 = vrot.slane %v247, %v256
        %v259 = vunpack.c.l.s4 1966171168
        %v260 = vunpack.c.0.s8 %v259
        %v261 = vlaneseq
        %v262 = vshrl.u32 %v261, 7
        %v263 = vsub.s32 %v260, %v262
        %v264 = vrot.slane %v248, %v263
        %v266 = vunpack.c.l.s4 1966171168
        %v267 = vunpack.c.0.s8 %v266
        %v268 = vlaneseq
        %v269 = vshrl.u32 %v268, 7
        %v270 = vsub.s32 %v267, %v269
        %v271 = vrot.slane %v249, %v270
        %v273 = vunpack.c.l.s4 1966171168
        %v274 = vunpack.c.0.s8 %v273
        %v275 = vlaneseq
        %v276 = vshrl.u32 %v275, 7
        %v277 = vsub.s32 %v274, %v276
        %v278 = vrot.slane %v250, %v277
        %v279 = vcombine.low %v257, %v264
        %v280 = vcombine.low %v271, %v278
        %v282 = vunpack.c.l.s4 1966171168
        %v283 = vunpack.c.0.s8 %v282
        %v284 = vlaneseq
        %v285 = vshrl.u32 %v284, 7
        %v286 = vsub.s32 %v283, %v285
        %v287 = vrot.slane %v279, %v286
        %v289 = vunpack.c.l.s4 1966171168
        %v290 = vunpack.c.0.s8 %v289
        %v291 = vlaneseq
        %v292 = vshrl.u32 %v291, 7
        %v293 = vsub.s32 %v290, %v292
        %v294 = vrot.slane %v280, %v293
        %v295 = vcombine.low %v287, %v294
        %vm298 = vcmask 15360
        %v299 = vsel %vm298, %v246, -inf
        %300 = vmax.xlane.f32.xlu0 %v299
        %v301 = vpop.xlane.xlu0 %300
        %v302 = vsel %vm298, %v295, -inf
        %303 = vmax.xlane.f32.xlu0 %v302
        %v304 = vpop.xlane.xlu0 %303
        %v305 = vmul.f32 %v301, 0.01
        %v306 = vmul.f32 %v304, 0.01
        %v307 = vmax.f32 %v301, %v305
        %v308 = vmax.f32 %v304, %v306
        %v311 = vlaneseq
        %v312 = vand.u32 %v311, 127
        %v313 = vlaneseq
        %v314 = vshrl.u32 %v313, 7
        %v315 = vsub.s32 %v312, %v314
        %v316 = vrot.slane %v307, %v315
        %v317 = vlaneseq
        %v318 = vshrl.u32 %v317, 7
        %v319 = vsub.s32 %v312, %v318
        %v320 = vrot.slane %v308, %v319
        %vm323 = vcmask 57344
        %324 = vst.msk [vmem:[%s153] sm:$0x1] %vm323, %v316
        %325 = vst.msk [vmem:[%s153 + $0x1] sm:$0x1] %vm323, %v320
        %326 = vrot.lane.b32.xlu0 %v166, 96
        %v327 = vpop.permute.xlu0 %326
        %328 = vrot.lane.b32.xlu0 %v171, 96
        %v329 = vpop.permute.xlu0 %328
        %330 = vrot.lane.b32.xlu0 %v175, 96
        %v331 = vpop.permute.xlu0 %330
        %332 = vrot.lane.b32.xlu0 %v179, 96
        %v333 = vpop.permute.xlu0 %332
        %334 = vrot.lane.b32.xlu0 %v183, 96
        %v335 = vpop.permute.xlu0 %334
        %336 = vrot.lane.b32.xlu0 %v187, 96
        %v337 = vpop.permute.xlu0 %336
        %338 = vrot.lane.b32.xlu0 %v191, 96
        %v339 = vpop.permute.xlu0 %338
        %340 = vrot.lane.b32.xlu0 %v195, 96
        %v341 = vpop.permute.xlu0 %340
        %342 = vrot.lane.b32.xlu0 %v167, 96
        %v343 = vpop.permute.xlu0 %342
        %344 = vrot.lane.b32.xlu0 %v173, 96
        %v345 = vpop.permute.xlu0 %344
        %346 = vrot.lane.b32.xlu0 %v177, 96
        %v347 = vpop.permute.xlu0 %346
        %348 = vrot.lane.b32.xlu0 %v181, 96
        %v349 = vpop.permute.xlu0 %348
        %350 = vrot.lane.b32.xlu0 %v185, 96
        %v351 = vpop.permute.xlu0 %350
        %352 = vrot.lane.b32.xlu0 %v189, 96
        %v353 = vpop.permute.xlu0 %352
        %354 = vrot.lane.b32.xlu0 %v193, 96
        %v355 = vpop.permute.xlu0 %354
        %356 = vrot.lane.b32.xlu0 %v197, 96
        %v357 = vpop.permute.xlu0 %356
        %v358 = vcombine.low %v327, %v329
        %v359 = vcombine.low %v331, %v333
        %v360 = vcombine.low %v335, %v337
        %v361 = vcombine.low %v339, %v341
        %v363 = vunpack.c.l.s4 1966171168
        %v364 = vunpack.c.0.s8 %v363
        %v365 = vlaneseq
        %v366 = vshrl.u32 %v365, 7
        %v367 = vsub.s32 %v364, %v366
        %v368 = vrot.slane %v358, %v367
        %v370 = vunpack.c.l.s4 1966171168
        %v371 = vunpack.c.0.s8 %v370
        %v372 = vlaneseq
        %v373 = vshrl.u32 %v372, 7
        %v374 = vsub.s32 %v371, %v373
        %v375 = vrot.slane %v359, %v374
        %v377 = vunpack.c.l.s4 1966171168
        %v378 = vunpack.c.0.s8 %v377
        %v379 = vlaneseq
        %v380 = vshrl.u32 %v379, 7
        %v381 = vsub.s32 %v378, %v380
        %v382 = vrot.slane %v360, %v381
        %v384 = vunpack.c.l.s4 1966171168
        %v385 = vunpack.c.0.s8 %v384
        %v386 = vlaneseq
        %v387 = vshrl.u32 %v386, 7
        %v388 = vsub.s32 %v385, %v387
        %v389 = vrot.slane %v361, %v388
        %v390 = vcombine.low %v368, %v375
        %v391 = vcombine.low %v382, %v389
        %v393 = vunpack.c.l.s4 1966171168
        %v394 = vunpack.c.0.s8 %v393
        %v395 = vlaneseq
        %v396 = vshrl.u32 %v395, 7
        %v397 = vsub.s32 %v394, %v396
        %v398 = vrot.slane %v390, %v397
        %v400 = vunpack.c.l.s4 1966171168
        %v401 = vunpack.c.0.s8 %v400
        %v402 = vlaneseq
        %v403 = vshrl.u32 %v402, 7
        %v404 = vsub.s32 %v401, %v403
        %v405 = vrot.slane %v391, %v404
        %v406 = vcombine.low %v398, %v405
        %v407 = vcombine.low %v343, %v345
        %v408 = vcombine.low %v347, %v349
        %v409 = vcombine.low %v351, %v353
        %v410 = vcombine.low %v355, %v357
        %v412 = vunpack.c.l.s4 1966171168
        %v413 = vunpack.c.0.s8 %v412
        %v414 = vlaneseq
        %v415 = vshrl.u32 %v414, 7
        %v416 = vsub.s32 %v413, %v415
        %v417 = vrot.slane %v407, %v416
        %v419 = vunpack.c.l.s4 1966171168
        %v420 = vunpack.c.0.s8 %v419
        %v421 = vlaneseq
        %v422 = vshrl.u32 %v421, 7
        %v423 = vsub.s32 %v420, %v422
        %v424 = vrot.slane %v408, %v423
        %v426 = vunpack.c.l.s4 1966171168
        %v427 = vunpack.c.0.s8 %v426
        %v428 = vlaneseq
        %v429 = vshrl.u32 %v428, 7
        %v430 = vsub.s32 %v427, %v429
        %v431 = vrot.slane %v409, %v430
        %v433 = vunpack.c.l.s4 1966171168
        %v434 = vunpack.c.0.s8 %v433
        %v435 = vlaneseq
        %v436 = vshrl.u32 %v435, 7
        %v437 = vsub.s32 %v434, %v436
        %v438 = vrot.slane %v410, %v437
        %v439 = vcombine.low %v417, %v424
        %v440 = vcombine.low %v431, %v438
        %v442 = vunpack.c.l.s4 1966171168
        %v443 = vunpack.c.0.s8 %v442
        %v444 = vlaneseq
        %v445 = vshrl.u32 %v444, 7
        %v446 = vsub.s32 %v443, %v445
        %v447 = vrot.slane %v439, %v446
        %v449 = vunpack.c.l.s4 1966171168
        %v450 = vunpack.c.0.s8 %v449
        %v451 = vlaneseq
        %v452 = vshrl.u32 %v451, 7
        %v453 = vsub.s32 %v450, %v452
        %v454 = vrot.slane %v440, %v453
        %v455 = vcombine.low %v447, %v454
        %v458 = vsel %vm298, %v406, -inf
        %459 = vmax.xlane.f32.xlu0 %v458
        %v460 = vpop.xlane.xlu0 %459
        %v461 = vsel %vm298, %v455, -inf
        %462 = vmax.xlane.f32.xlu0 %v461
        %v463 = vpop.xlane.xlu0 %462
        %v464 = vmul.f32 %v460, 0.01
        %v465 = vmul.f32 %v463, 0.01
        %v466 = vmax.f32 %v460, %v464
        %v467 = vmax.f32 %v463, %v465
        %v470 = vadd.s32 %v312, 4294967288
        %v471 = vlaneseq
        %v472 = vshrl.u32 %v471, 7
        %v473 = vsub.s32 %v470, %v472
        %v474 = vrot.slane %v466, %v473
        %v475 = vlaneseq
        %v476 = vshrl.u32 %v475, 7
        %v477 = vsub.s32 %v470, %v476
        %v478 = vrot.slane %v467, %v477
        %vm481 = vcmask 122944
        %482 = vst.msk [vmem:[%s153] sm:$0x1] %vm481, %v474
        %483 = vst.msk [vmem:[%s153 + $0x1] sm:$0x1] %vm481, %v478
        %484 = vrot.lane.b32.xlu0 %v166, 64
        %v485 = vpop.permute.xlu0 %484
        %486 = vrot.lane.b32.xlu0 %v171, 64
        %v487 = vpop.permute.xlu0 %486
        %488 = vrot.lane.b32.xlu0 %v175, 64
        %v489 = vpop.permute.xlu0 %488
        %490 = vrot.lane.b32.xlu0 %v179, 64
        %v491 = vpop.permute.xlu0 %490
        %492 = vrot.lane.b32.xlu0 %v183, 64
        %v493 = vpop.permute.xlu0 %492
        %494 = vrot.lane.b32.xlu0 %v187, 64
        %v495 = vpop.permute.xlu0 %494
        %496 = vrot.lane.b32.xlu0 %v191, 64
        %v497 = vpop.permute.xlu0 %496
        %498 = vrot.lane.b32.xlu0 %v195, 64
        %v499 = vpop.permute.xlu0 %498
        %500 = vrot.lane.b32.xlu0 %v167, 64
        %v501 = vpop.permute.xlu0 %500
        %502 = vrot.lane.b32.xlu0 %v173, 64
        %v503 = vpop.permute.xlu0 %502
        %504 = vrot.lane.b32.xlu0 %v177, 64
        %v505 = vpop.permute.xlu0 %504
        %506 = vrot.lane.b32.xlu0 %v181, 64
        %v507 = vpop.permute.xlu0 %506
        %508 = vrot.lane.b32.xlu0 %v185, 64
        %v509 = vpop.permute.xlu0 %508
        %510 = vrot.lane.b32.xlu0 %v189, 64
        %v511 = vpop.permute.xlu0 %510
        %512 = vrot.lane.b32.xlu0 %v193, 64
        %v513 = vpop.permute.xlu0 %512
        %514 = vrot.lane.b32.xlu0 %v197, 64
        %v515 = vpop.permute.xlu0 %514
        %v516 = vcombine.low %v485, %v487
        %v517 = vcombine.low %v489, %v491
        %v518 = vcombine.low %v493, %v495
        %v519 = vcombine.low %v497, %v499
        %v521 = vunpack.c.l.s4 1966171168
        %v522 = vunpack.c.0.s8 %v521
        %v523 = vlaneseq
        %v524 = vshrl.u32 %v523, 7
        %v525 = vsub.s32 %v522, %v524
        %v526 = vrot.slane %v516, %v525
        %v528 = vunpack.c.l.s4 1966171168
        %v529 = vunpack.c.0.s8 %v528
        %v530 = vlaneseq
        %v531 = vshrl.u32 %v530, 7
        %v532 = vsub.s32 %v529, %v531
        %v533 = vrot.slane %v517, %v532
        %v535 = vunpack.c.l.s4 1966171168
        %v536 = vunpack.c.0.s8 %v535
        %v537 = vlaneseq
        %v538 = vshrl.u32 %v537, 7
        %v539 = vsub.s32 %v536, %v538
        %v540 = vrot.slane %v518, %v539
        %v542 = vunpack.c.l.s4 1966171168
        %v543 = vunpack.c.0.s8 %v542
        %v544 = vlaneseq
        %v545 = vshrl.u32 %v544, 7
        %v546 = vsub.s32 %v543, %v545
        %v547 = vrot.slane %v519, %v546
        %v548 = vcombine.low %v526, %v533
        %v549 = vcombine.low %v540, %v547
        %v551 = vunpack.c.l.s4 1966171168
        %v552 = vunpack.c.0.s8 %v551
        %v553 = vlaneseq
        %v554 = vshrl.u32 %v553, 7
        %v555 = vsub.s32 %v552, %v554
        %v556 = vrot.slane %v548, %v555
        %v558 = vunpack.c.l.s4 1966171168
        %v559 = vunpack.c.0.s8 %v558
        %v560 = vlaneseq
        %v561 = vshrl.u32 %v560, 7
        %v562 = vsub.s32 %v559, %v561
        %v563 = vrot.slane %v549, %v562
        %v564 = vcombine.low %v556, %v563
        %v565 = vcombine.low %v501, %v503
        %v566 = vcombine.low %v505, %v507
        %v567 = vcombine.low %v509, %v511
        %v568 = vcombine.low %v513, %v515
        %v570 = vunpack.c.l.s4 1966171168
        %v571 = vunpack.c.0.s8 %v570
        %v572 = vlaneseq
        %v573 = vshrl.u32 %v572, 7
        %v574 = vsub.s32 %v571, %v573
        %v575 = vrot.slane %v565, %v574
        %v577 = vunpack.c.l.s4 1966171168
        %v578 = vunpack.c.0.s8 %v577
        %v579 = vlaneseq
        %v580 = vshrl.u32 %v579, 7
        %v581 = vsub.s32 %v578, %v580
        %v582 = vrot.slane %v566, %v581
        %v584 = vunpack.c.l.s4 1966171168
        %v585 = vunpack.c.0.s8 %v584
        %v586 = vlaneseq
        %v587 = vshrl.u32 %v586, 7
        %v588 = vsub.s32 %v585, %v587
        %v589 = vrot.slane %v567, %v588
        %v591 = vunpack.c.l.s4 1966171168
        %v592 = vunpack.c.0.s8 %v591
        %v593 = vlaneseq
        %v594 = vshrl.u32 %v593, 7
        %v595 = vsub.s32 %v592, %v594
        %v596 = vrot.slane %v568, %v595
        %v597 = vcombine.low %v575, %v582
        %v598 = vcombine.low %v589, %v596
        %v600 = vunpack.c.l.s4 1966171168
        %v601 = vunpack.c.0.s8 %v600
        %v602 = vlaneseq
        %v603 = vshrl.u32 %v602, 7
        %v604 = vsub.s32 %v601, %v603
        %v605 = vrot.slane %v597, %v604
        %v607 = vunpack.c.l.s4 1966171168
        %v608 = vunpack.c.0.s8 %v607
        %v609 = vlaneseq
        %v610 = vshrl.u32 %v609, 7
        %v611 = vsub.s32 %v608, %v610
        %v612 = vrot.slane %v598, %v611
        %v613 = vcombine.low %v605, %v612
        %v616 = vsel %vm298, %v564, -inf
        %617 = vmax.xlane.f32.xlu0 %v616
        %v618 = vpop.xlane.xlu0 %617
        %v619 = vsel %vm298, %v613, -inf
        %620 = vmax.xlane.f32.xlu0 %v619
        %v621 = vpop.xlane.xlu0 %620
        %v622 = vmul.f32 %v618, 0.01
        %v623 = vmul.f32 %v621, 0.01
        %v624 = vmax.f32 %v618, %v622
        %v625 = vmax.f32 %v621, %v623
        %v628 = vadd.s32 %v312, 4294967280
        %v629 = vlaneseq
        %v630 = vshrl.u32 %v629, 7
        %v631 = vsub.s32 %v628, %v630
        %v632 = vrot.slane %v624, %v631
        %v633 = vlaneseq
        %v634 = vshrl.u32 %v633, 7
        %v635 = vsub.s32 %v628, %v634
        %v636 = vrot.slane %v625, %v635
        %vm639 = vcmask 188544
        %640 = vst.msk [vmem:[%s153] sm:$0x1] %vm639, %v632
        %641 = vst.msk [vmem:[%s153 + $0x1] sm:$0x1] %vm639, %v636
        %642 = vrot.lane.b32.xlu0 %v166, 32
        %v643 = vpop.permute.xlu0 %642
        %644 = vrot.lane.b32.xlu0 %v171, 32
        %v645 = vpop.permute.xlu0 %644
        %646 = vrot.lane.b32.xlu0 %v175, 32
        %v647 = vpop.permute.xlu0 %646
        %648 = vrot.lane.b32.xlu0 %v179, 32
        %v649 = vpop.permute.xlu0 %648
        %650 = vrot.lane.b32.xlu0 %v183, 32
        %v651 = vpop.permute.xlu0 %650
        %652 = vrot.lane.b32.xlu0 %v187, 32
        %v653 = vpop.permute.xlu0 %652
        %654 = vrot.lane.b32.xlu0 %v191, 32
        %v655 = vpop.permute.xlu0 %654
        %656 = vrot.lane.b32.xlu0 %v195, 32
        %v657 = vpop.permute.xlu0 %656
        %658 = vrot.lane.b32.xlu0 %v167, 32
        %v659 = vpop.permute.xlu0 %658
        %660 = vrot.lane.b32.xlu0 %v173, 32
        %v661 = vpop.permute.xlu0 %660
        %662 = vrot.lane.b32.xlu0 %v177, 32
        %v663 = vpop.permute.xlu0 %662
        %664 = vrot.lane.b32.xlu0 %v181, 32
        %v665 = vpop.permute.xlu0 %664
        %666 = vrot.lane.b32.xlu0 %v185, 32
        %v667 = vpop.permute.xlu0 %666
        %668 = vrot.lane.b32.xlu0 %v189, 32
        %v669 = vpop.permute.xlu0 %668
        %670 = vrot.lane.b32.xlu0 %v193, 32
        %v671 = vpop.permute.xlu0 %670
        %672 = vrot.lane.b32.xlu0 %v197, 32
        %v673 = vpop.permute.xlu0 %672
        %v674 = vcombine.low %v643, %v645
        %v675 = vcombine.low %v647, %v649
        %v676 = vcombine.low %v651, %v653
        %v677 = vcombine.low %v655, %v657
        %v679 = vunpack.c.l.s4 1966171168
        %v680 = vunpack.c.0.s8 %v679
        %v681 = vlaneseq
        %v682 = vshrl.u32 %v681, 7
        %v683 = vsub.s32 %v680, %v682
        %v684 = vrot.slane %v674, %v683
        %v686 = vunpack.c.l.s4 1966171168
        %v687 = vunpack.c.0.s8 %v686
        %v688 = vlaneseq
        %v689 = vshrl.u32 %v688, 7
        %v690 = vsub.s32 %v687, %v689
        %v691 = vrot.slane %v675, %v690
        %v693 = vunpack.c.l.s4 1966171168
        %v694 = vunpack.c.0.s8 %v693
        %v695 = vlaneseq
        %v696 = vshrl.u32 %v695, 7
        %v697 = vsub.s32 %v694, %v696
        %v698 = vrot.slane %v676, %v697
        %v700 = vunpack.c.l.s4 1966171168
        %v701 = vunpack.c.0.s8 %v700
        %v702 = vlaneseq
        %v703 = vshrl.u32 %v702, 7
        %v704 = vsub.s32 %v701, %v703
        %v705 = vrot.slane %v677, %v704
        %v706 = vcombine.low %v684, %v691
        %v707 = vcombine.low %v698, %v705
        %v709 = vunpack.c.l.s4 1966171168
        %v710 = vunpack.c.0.s8 %v709
        %v711 = vlaneseq
        %v712 = vshrl.u32 %v711, 7
        %v713 = vsub.s32 %v710, %v712
        %v714 = vrot.slane %v706, %v713
        %v716 = vunpack.c.l.s4 1966171168
        %v717 = vunpack.c.0.s8 %v716
        %v718 = vlaneseq
        %v719 = vshrl.u32 %v718, 7
        %v720 = vsub.s32 %v717, %v719
        %v721 = vrot.slane %v707, %v720
        %v722 = vcombine.low %v714, %v721
        %v723 = vcombine.low %v659, %v661
        %v724 = vcombine.low %v663, %v665
        %v725 = vcombine.low %v667, %v669
        %v726 = vcombine.low %v671, %v673
        %v728 = vunpack.c.l.s4 1966171168
        %v729 = vunpack.c.0.s8 %v728
        %v730 = vlaneseq
        %v731 = vshrl.u32 %v730, 7
        %v732 = vsub.s32 %v729, %v731
        %v733 = vrot.slane %v723, %v732
        %v735 = vunpack.c.l.s4 1966171168
        %v736 = vunpack.c.0.s8 %v735
        %v737 = vlaneseq
        %v738 = vshrl.u32 %v737, 7
        %v739 = vsub.s32 %v736, %v738
        %v740 = vrot.slane %v724, %v739
        %v742 = vunpack.c.l.s4 1966171168
        %v743 = vunpack.c.0.s8 %v742
        %v744 = vlaneseq
        %v745 = vshrl.u32 %v744, 7
        %v746 = vsub.s32 %v743, %v745
        %v747 = vrot.slane %v725, %v746
        %v749 = vunpack.c.l.s4 1966171168
        %v750 = vunpack.c.0.s8 %v749
        %v751 = vlaneseq
        %v752 = vshrl.u32 %v751, 7
        %v753 = vsub.s32 %v750, %v752
        %v754 = vrot.slane %v726, %v753
        %v755 = vcombine.low %v733, %v740
        %v756 = vcombine.low %v747, %v754
        %v758 = vunpack.c.l.s4 1966171168
        %v759 = vunpack.c.0.s8 %v758
        %v760 = vlaneseq
        %v761 = vshrl.u32 %v760, 7
        %v762 = vsub.s32 %v759, %v761
        %v763 = vrot.slane %v755, %v762
        %v765 = vunpack.c.l.s4 1966171168
        %v766 = vunpack.c.0.s8 %v765
        %v767 = vlaneseq
        %v768 = vshrl.u32 %v767, 7
        %v769 = vsub.s32 %v766, %v768
        %v770 = vrot.slane %v756, %v769
        %v771 = vcombine.low %v763, %v770
        %v774 = vsel %vm298, %v722, -inf
        %775 = vmax.xlane.f32.xlu0 %v774
        %v776 = vpop.xlane.xlu0 %775
        %v777 = vsel %vm298, %v771, -inf
        %778 = vmax.xlane.f32.xlu0 %v777
        %v779 = vpop.xlane.xlu0 %778
        %v780 = vmul.f32 %v776, 0.01
        %v781 = vmul.f32 %v779, 0.01
        %v782 = vmax.f32 %v776, %v780
        %v783 = vmax.f32 %v779, %v781
        %v786 = vadd.s32 %v312, 4294967272
        %v787 = vlaneseq
        %v788 = vshrl.u32 %v787, 7
        %v789 = vsub.s32 %v786, %v788
        %v790 = vrot.slane %v782, %v789
        %v791 = vlaneseq
        %v792 = vshrl.u32 %v791, 7
        %v793 = vsub.s32 %v786, %v792
        %v794 = vrot.slane %v783, %v793
        %vm797 = vcmask 254144
        %798 = vst.msk [vmem:[%s153] sm:$0x1] %vm797, %v790
        %799 = vst.msk [vmem:[%s153 + $0x1] sm:$0x1] %vm797, %v794
        %v800 = vrot.slane %v156, 1
        %v801 = vrot.slane %v157, 1
        %v804 = vrot.slane %v161, 1
        %v805 = vrot.slane %v163, 1
        %v808 = vmax.f32 %v800, %v804
        %v809 = vmax.f32 %v801, %v805
        %812 = vrot.lane.b32.xlu0 %v808, 126
        %v813 = vpop.permute.xlu0 %812
        %814 = vrot.lane.b32.xlu0 %v809, 126
        %v815 = vpop.permute.xlu0 %814
        %816 = vrot.lane.b32.xlu0 %v808, 124
        %v817 = vpop.permute.xlu0 %816
        %818 = vrot.lane.b32.xlu0 %v809, 124
        %v819 = vpop.permute.xlu0 %818
        %820 = vrot.lane.b32.xlu0 %v808, 122
        %v821 = vpop.permute.xlu0 %820
        %822 = vrot.lane.b32.xlu0 %v809, 122
        %v823 = vpop.permute.xlu0 %822
        %824 = vrot.lane.b32.xlu0 %v808, 120
        %v825 = vpop.permute.xlu0 %824
        %826 = vrot.lane.b32.xlu0 %v809, 120
        %v827 = vpop.permute.xlu0 %826
        %828 = vrot.lane.b32.xlu0 %v808, 118
        %v829 = vpop.permute.xlu0 %828
        %830 = vrot.lane.b32.xlu0 %v809, 118
        %v831 = vpop.permute.xlu0 %830
        %832 = vrot.lane.b32.xlu0 %v808, 116
        %v833 = vpop.permute.xlu0 %832
        %834 = vrot.lane.b32.xlu0 %v809, 116
        %v835 = vpop.permute.xlu0 %834
        %836 = vrot.lane.b32.xlu0 %v808, 114
        %v837 = vpop.permute.xlu0 %836
        %838 = vrot.lane.b32.xlu0 %v809, 114
        %v839 = vpop.permute.xlu0 %838
        %v840 = vcombine.low %v808, %v813
        %v841 = vcombine.low %v817, %v821
        %v842 = vcombine.low %v825, %v829
        %v843 = vcombine.low %v833, %v837
        %v845 = vunpack.c.l.s4 1966171168
        %v846 = vunpack.c.0.s8 %v845
        %v847 = vlaneseq
        %v848 = vshrl.u32 %v847, 7
        %v849 = vsub.s32 %v846, %v848
        %v850 = vrot.slane %v840, %v849
        %v852 = vunpack.c.l.s4 1966171168
        %v853 = vunpack.c.0.s8 %v852
        %v854 = vlaneseq
        %v855 = vshrl.u32 %v854, 7
        %v856 = vsub.s32 %v853, %v855
        %v857 = vrot.slane %v841, %v856
        %v859 = vunpack.c.l.s4 1966171168
        %v860 = vunpack.c.0.s8 %v859
        %v861 = vlaneseq
        %v862 = vshrl.u32 %v861, 7
        %v863 = vsub.s32 %v860, %v862
        %v864 = vrot.slane %v842, %v863
        %v866 = vunpack.c.l.s4 1966171168
        %v867 = vunpack.c.0.s8 %v866
        %v868 = vlaneseq
        %v869 = vshrl.u32 %v868, 7
        %v870 = vsub.s32 %v867, %v869
        %v871 = vrot.slane %v843, %v870
        %v872 = vcombine.low %v850, %v857
        %v873 = vcombine.low %v864, %v871
        %v875 = vunpack.c.l.s4 1966171168
        %v876 = vunpack.c.0.s8 %v875
        %v877 = vlaneseq
        %v878 = vshrl.u32 %v877, 7
        %v879 = vsub.s32 %v876, %v878
        %v880 = vrot.slane %v872, %v879
        %v882 = vunpack.c.l.s4 1966171168
        %v883 = vunpack.c.0.s8 %v882
        %v884 = vlaneseq
        %v885 = vshrl.u32 %v884, 7
        %v886 = vsub.s32 %v883, %v885
        %v887 = vrot.slane %v873, %v886
        %v888 = vcombine.low %v880, %v887
        %v889 = vcombine.low %v809, %v815
        %v890 = vcombine.low %v819, %v823
        %v891 = vcombine.low %v827, %v831
        %v892 = vcombine.low %v835, %v839
        %v894 = vunpack.c.l.s4 1966171168
        %v895 = vunpack.c.0.s8 %v894
        %v896 = vlaneseq
        %v897 = vshrl.u32 %v896, 7
        %v898 = vsub.s32 %v895, %v897
        %v899 = vrot.slane %v889, %v898
        %v901 = vunpack.c.l.s4 1966171168
        %v902 = vunpack.c.0.s8 %v901
        %v903 = vlaneseq
        %v904 = vshrl.u32 %v903, 7
        %v905 = vsub.s32 %v902, %v904
        %v906 = vrot.slane %v890, %v905
        %v908 = vunpack.c.l.s4 1966171168
        %v909 = vunpack.c.0.s8 %v908
        %v910 = vlaneseq
        %v911 = vshrl.u32 %v910, 7
        %v912 = vsub.s32 %v909, %v911
        %v913 = vrot.slane %v891, %v912
        %v915 = vunpack.c.l.s4 1966171168
        %v916 = vunpack.c.0.s8 %v915
        %v917 = vlaneseq
        %v918 = vshrl.u32 %v917, 7
        %v919 = vsub.s32 %v916, %v918
        %v920 = vrot.slane %v892, %v919
        %v921 = vcombine.low %v899, %v906
        %v922 = vcombine.low %v913, %v920
        %v924 = vunpack.c.l.s4 1966171168
        %v925 = vunpack.c.0.s8 %v924
        %v926 = vlaneseq
        %v927 = vshrl.u32 %v926, 7
        %v928 = vsub.s32 %v925, %v927
        %v929 = vrot.slane %v921, %v928
        %v931 = vunpack.c.l.s4 1966171168
        %v932 = vunpack.c.0.s8 %v931
        %v933 = vlaneseq
        %v934 = vshrl.u32 %v933, 7
        %v935 = vsub.s32 %v932, %v934
        %v936 = vrot.slane %v922, %v935
        %v937 = vcombine.low %v929, %v936
        %v940 = vsel %vm298, %v888, -inf
        %941 = vmax.xlane.f32.xlu0 %v940
        %v942 = vpop.xlane.xlu0 %941
        %v943 = vsel %vm298, %v937, -inf
        %944 = vmax.xlane.f32.xlu0 %v943
        %v945 = vpop.xlane.xlu0 %944
        %v946 = vmul.f32 %v942, 0.01
        %v947 = vmul.f32 %v945, 0.01
        %v948 = vmax.f32 %v942, %v946
        %v949 = vmax.f32 %v945, %v947
        %v952 = vadd.s32 %v312, 4294967264
        %v953 = vlaneseq
        %v954 = vshrl.u32 %v953, 7
        %v955 = vsub.s32 %v952, %v954
        %v956 = vrot.slane %v948, %v955
        %v957 = vlaneseq
        %v958 = vshrl.u32 %v957, 7
        %v959 = vsub.s32 %v952, %v958
        %v960 = vrot.slane %v949, %v959
        %vm963 = vcmask 319744
        %964 = vst.msk [vmem:[%s153] sm:$0x1] %vm963, %v956
        %965 = vst.msk [vmem:[%s153 + $0x1] sm:$0x1] %vm963, %v960
        %966 = vrot.lane.b32.xlu0 %v156, 96
        %v967 = vpop.permute.xlu0 %966
        %968 = vrot.lane.b32.xlu0 %v157, 96
        %v969 = vpop.permute.xlu0 %968
        %v970 = vrot.slane %v967, 1
        %v971 = vrot.slane %v969, 1
        %974 = vrot.lane.b32.xlu0 %v156, 80
        %v975 = vpop.permute.xlu0 %974
        %976 = vrot.lane.b32.xlu0 %v157, 80
        %v977 = vpop.permute.xlu0 %976
        %v978 = vrot.slane %v975, 1
        %v979 = vrot.slane %v977, 1
        %v982 = vmax.f32 %v970, %v978
        %v983 = vmax.f32 %v971, %v979
        %986 = vrot.lane.b32.xlu0 %v982, 126
        %v987 = vpop.permute.xlu0 %986
        %988 = vrot.lane.b32.xlu0 %v983, 126
        %v989 = vpop.permute.xlu0 %988
        %990 = vrot.lane.b32.xlu0 %v982, 124
        %v991 = vpop.permute.xlu0 %990
        %992 = vrot.lane.b32.xlu0 %v983, 124
        %v993 = vpop.permute.xlu0 %992
        %994 = vrot.lane.b32.xlu0 %v982, 122
        %v995 = vpop.permute.xlu0 %994
        %996 = vrot.lane.b32.xlu0 %v983, 122
        %v997 = vpop.permute.xlu0 %996
        %998 = vrot.lane.b32.xlu0 %v982, 120
        %v999 = vpop.permute.xlu0 %998
        %1000 = vrot.lane.b32.xlu0 %v983, 120
        %v1001 = vpop.permute.xlu0 %1000
        %1002 = vrot.lane.b32.xlu0 %v982, 118
        %v1003 = vpop.permute.xlu0 %1002
        %1004 = vrot.lane.b32.xlu0 %v983, 118
        %v1005 = vpop.permute.xlu0 %1004
        %1006 = vrot.lane.b32.xlu0 %v982, 116
        %v1007 = vpop.permute.xlu0 %1006
        %1008 = vrot.lane.b32.xlu0 %v983, 116
        %v1009 = vpop.permute.xlu0 %1008
        %1010 = vrot.lane.b32.xlu0 %v982, 114
        %v1011 = vpop.permute.xlu0 %1010
        %1012 = vrot.lane.b32.xlu0 %v983, 114
        %v1013 = vpop.permute.xlu0 %1012
        %v1014 = vcombine.low %v982, %v987
        %v1015 = vcombine.low %v991, %v995
        %v1016 = vcombine.low %v999, %v1003
        %v1017 = vcombine.low %v1007, %v1011
        %v1019 = vunpack.c.l.s4 1966171168
        %v1020 = vunpack.c.0.s8 %v1019
        %v1021 = vlaneseq
        %v1022 = vshrl.u32 %v1021, 7
        %v1023 = vsub.s32 %v1020, %v1022
        %v1024 = vrot.slane %v1014, %v1023
        %v1026 = vunpack.c.l.s4 1966171168
        %v1027 = vunpack.c.0.s8 %v1026
        %v1028 = vlaneseq
        %v1029 = vshrl.u32 %v1028, 7
        %v1030 = vsub.s32 %v1027, %v1029
        %v1031 = vrot.slane %v1015, %v1030
        %v1033 = vunpack.c.l.s4 1966171168
        %v1034 = vunpack.c.0.s8 %v1033
        %v1035 = vlaneseq
        %v1036 = vshrl.u32 %v1035, 7
        %v1037 = vsub.s32 %v1034, %v1036
        %v1038 = vrot.slane %v1016, %v1037
        %v1040 = vunpack.c.l.s4 1966171168
        %v1041 = vunpack.c.0.s8 %v1040
        %v1042 = vlaneseq
        %v1043 = vshrl.u32 %v1042, 7
        %v1044 = vsub.s32 %v1041, %v1043
        %v1045 = vrot.slane %v1017, %v1044
        %v1046 = vcombine.low %v1024, %v1031
        %v1047 = vcombine.low %v1038, %v1045
        %v1049 = vunpack.c.l.s4 1966171168
        %v1050 = vunpack.c.0.s8 %v1049
        %v1051 = vlaneseq
        %v1052 = vshrl.u32 %v1051, 7
        %v1053 = vsub.s32 %v1050, %v1052
        %v1054 = vrot.slane %v1046, %v1053
        %v1056 = vunpack.c.l.s4 1966171168
        %v1057 = vunpack.c.0.s8 %v1056
        %v1058 = vlaneseq
        %v1059 = vshrl.u32 %v1058, 7
        %v1060 = vsub.s32 %v1057, %v1059
        %v1061 = vrot.slane %v1047, %v1060
        %v1062 = vcombine.low %v1054, %v1061
        %v1063 = vcombine.low %v983, %v989
        %v1064 = vcombine.low %v993, %v997
        %v1065 = vcombine.low %v1001, %v1005
        %v1066 = vcombine.low %v1009, %v1013
        %v1068 = vunpack.c.l.s4 1966171168
        %v1069 = vunpack.c.0.s8 %v1068
        %v1070 = vlaneseq
        %v1071 = vshrl.u32 %v1070, 7
        %v1072 = vsub.s32 %v1069, %v1071
        %v1073 = vrot.slane %v1063, %v1072
        %v1075 = vunpack.c.l.s4 1966171168
        %v1076 = vunpack.c.0.s8 %v1075
        %v1077 = vlaneseq
        %v1078 = vshrl.u32 %v1077, 7
        %v1079 = vsub.s32 %v1076, %v1078
        %v1080 = vrot.slane %v1064, %v1079
        %v1082 = vunpack.c.l.s4 1966171168
        %v1083 = vunpack.c.0.s8 %v1082
        %v1084 = vlaneseq
        %v1085 = vshrl.u32 %v1084, 7
        %v1086 = vsub.s32 %v1083, %v1085
        %v1087 = vrot.slane %v1065, %v1086
        %v1089 = vunpack.c.l.s4 1966171168
        %v1090 = vunpack.c.0.s8 %v1089
        %v1091 = vlaneseq
        %v1092 = vshrl.u32 %v1091, 7
        %v1093 = vsub.s32 %v1090, %v1092
        %v1094 = vrot.slane %v1066, %v1093
        %v1095 = vcombine.low %v1073, %v1080
        %v1096 = vcombine.low %v1087, %v1094
        %v1098 = vunpack.c.l.s4 1966171168
        %v1099 = vunpack.c.0.s8 %v1098
        %v1100 = vlaneseq
        %v1101 = vshrl.u32 %v1100, 7
        %v1102 = vsub.s32 %v1099, %v1101
        %v1103 = vrot.slane %v1095, %v1102
        %v1105 = vunpack.c.l.s4 1966171168
        %v1106 = vunpack.c.0.s8 %v1105
        %v1107 = vlaneseq
        %v1108 = vshrl.u32 %v1107, 7
        %v1109 = vsub.s32 %v1106, %v1108
        %v1110 = vrot.slane %v1096, %v1109
        %v1111 = vcombine.low %v1103, %v1110
        %v1114 = vsel %vm298, %v1062, -inf
        %1115 = vmax.xlane.f32.xlu0 %v1114
        %v1116 = vpop.xlane.xlu0 %1115
        %v1117 = vsel %vm298, %v1111, -inf
        %1118 = vmax.xlane.f32.xlu0 %v1117
        %v1119 = vpop.xlane.xlu0 %1118
        %v1120 = vmul.f32 %v1116, 0.01
        %v1121 = vmul.f32 %v1119, 0.01
        %v1122 = vmax.f32 %v1116, %v1120
        %v1123 = vmax.f32 %v1119, %v1121
        %v1126 = vadd.s32 %v312, 4294967256
        %v1127 = vlaneseq
        %v1128 = vshrl.u32 %v1127, 7
        %v1129 = vsub.s32 %v1126, %v1128
        %v1130 = vrot.slane %v1122, %v1129
        %v1131 = vlaneseq
        %v1132 = vshrl.u32 %v1131, 7
        %v1133 = vsub.s32 %v1126, %v1132
        %v1134 = vrot.slane %v1123, %v1133
        %vm1137 = vcmask 385344
        %1138 = vst.msk [vmem:[%s153] sm:$0x1] %vm1137, %v1130
        %1139 = vst.msk [vmem:[%s153 + $0x1] sm:$0x1] %vm1137, %v1134
        %1140 = vrot.lane.b32.xlu0 %v156, 64
        %v1141 = vpop.permute.xlu0 %1140
        %1142 = vrot.lane.b32.xlu0 %v157, 64
        %v1143 = vpop.permute.xlu0 %1142
        %v1144 = vrot.slane %v1141, 1
        %v1145 = vrot.slane %v1143, 1
        %1148 = vrot.lane.b32.xlu0 %v156, 48
        %v1149 = vpop.permute.xlu0 %1148
        %1150 = vrot.lane.b32.xlu0 %v157, 48
        %v1151 = vpop.permute.xlu0 %1150
        %v1152 = vrot.slane %v1149, 1
        %v1153 = vrot.slane %v1151, 1
        %v1156 = vmax.f32 %v1144, %v1152
        %v1157 = vmax.f32 %v1145, %v1153
        %1160 = vrot.lane.b32.xlu0 %v1156, 126
        %v1161 = vpop.permute.xlu0 %1160
        %1162 = vrot.lane.b32.xlu0 %v1157, 126
        %v1163 = vpop.permute.xlu0 %1162
        %1164 = vrot.lane.b32.xlu0 %v1156, 124
        %v1165 = vpop.permute.xlu0 %1164
        %1166 = vrot.lane.b32.xlu0 %v1157, 124
        %v1167 = vpop.permute.xlu0 %1166
        %1168 = vrot.lane.b32.xlu0 %v1156, 122
        %v1169 = vpop.permute.xlu0 %1168
        %1170 = vrot.lane.b32.xlu0 %v1157, 122
        %v1171 = vpop.permute.xlu0 %1170
        %1172 = vrot.lane.b32.xlu0 %v1156, 120
        %v1173 = vpop.permute.xlu0 %1172
        %1174 = vrot.lane.b32.xlu0 %v1157, 120
        %v1175 = vpop.permute.xlu0 %1174
        %1176 = vrot.lane.b32.xlu0 %v1156, 118
        %v1177 = vpop.permute.xlu0 %1176
        %1178 = vrot.lane.b32.xlu0 %v1157, 118
        %v1179 = vpop.permute.xlu0 %1178
        %1180 = vrot.lane.b32.xlu0 %v1156, 116
        %v1181 = vpop.permute.xlu0 %1180
        %1182 = vrot.lane.b32.xlu0 %v1157, 116
        %v1183 = vpop.permute.xlu0 %1182
        %1184 = vrot.lane.b32.xlu0 %v1156, 114
        %v1185 = vpop.permute.xlu0 %1184
        %1186 = vrot.lane.b32.xlu0 %v1157, 114
        %v1187 = vpop.permute.xlu0 %1186
        %v1188 = vcombine.low %v1156, %v1161
        %v1189 = vcombine.low %v1165, %v1169
        %v1190 = vcombine.low %v1173, %v1177
        %v1191 = vcombine.low %v1181, %v1185
        %v1193 = vunpack.c.l.s4 1966171168
        %v1194 = vunpack.c.0.s8 %v1193
        %v1195 = vlaneseq
        %v1196 = vshrl.u32 %v1195, 7
        %v1197 = vsub.s32 %v1194, %v1196
        %v1198 = vrot.slane %v1188, %v1197
        %v1200 = vunpack.c.l.s4 1966171168
        %v1201 = vunpack.c.0.s8 %v1200
        %v1202 = vlaneseq
        %v1203 = vshrl.u32 %v1202, 7
        %v1204 = vsub.s32 %v1201, %v1203
        %v1205 = vrot.slane %v1189, %v1204
        %v1207 = vunpack.c.l.s4 1966171168
        %v1208 = vunpack.c.0.s8 %v1207
        %v1209 = vlaneseq
        %v1210 = vshrl.u32 %v1209, 7
        %v1211 = vsub.s32 %v1208, %v1210
        %v1212 = vrot.slane %v1190, %v1211
        %v1214 = vunpack.c.l.s4 1966171168
        %v1215 = vunpack.c.0.s8 %v1214
        %v1216 = vlaneseq
        %v1217 = vshrl.u32 %v1216, 7
        %v1218 = vsub.s32 %v1215, %v1217
        %v1219 = vrot.slane %v1191, %v1218
        %v1220 = vcombine.low %v1198, %v1205
        %v1221 = vcombine.low %v1212, %v1219
        %v1223 = vunpack.c.l.s4 1966171168
        %v1224 = vunpack.c.0.s8 %v1223
        %v1225 = vlaneseq
        %v1226 = vshrl.u32 %v1225, 7
        %v1227 = vsub.s32 %v1224, %v1226
        %v1228 = vrot.slane %v1220, %v1227
        %v1230 = vunpack.c.l.s4 1966171168
        %v1231 = vunpack.c.0.s8 %v1230
        %v1232 = vlaneseq
        %v1233 = vshrl.u32 %v1232, 7
        %v1234 = vsub.s32 %v1231, %v1233
        %v1235 = vrot.slane %v1221, %v1234
        %v1236 = vcombine.low %v1228, %v1235
        %v1237 = vcombine.low %v1157, %v1163
        %v1238 = vcombine.low %v1167, %v1171
        %v1239 = vcombine.low %v1175, %v1179
        %v1240 = vcombine.low %v1183, %v1187
        %v1242 = vunpack.c.l.s4 1966171168
        %v1243 = vunpack.c.0.s8 %v1242
        %v1244 = vlaneseq
        %v1245 = vshrl.u32 %v1244, 7
        %v1246 = vsub.s32 %v1243, %v1245
        %v1247 = vrot.slane %v1237, %v1246
        %v1249 = vunpack.c.l.s4 1966171168
        %v1250 = vunpack.c.0.s8 %v1249
        %v1251 = vlaneseq
        %v1252 = vshrl.u32 %v1251, 7
        %v1253 = vsub.s32 %v1250, %v1252
        %v1254 = vrot.slane %v1238, %v1253
        %v1256 = vunpack.c.l.s4 1966171168
        %v1257 = vunpack.c.0.s8 %v1256
        %v1258 = vlaneseq
        %v1259 = vshrl.u32 %v1258, 7
        %v1260 = vsub.s32 %v1257, %v1259
        %v1261 = vrot.slane %v1239, %v1260
        %v1263 = vunpack.c.l.s4 1966171168
        %v1264 = vunpack.c.0.s8 %v1263
        %v1265 = vlaneseq
        %v1266 = vshrl.u32 %v1265, 7
        %v1267 = vsub.s32 %v1264, %v1266
        %v1268 = vrot.slane %v1240, %v1267
        %v1269 = vcombine.low %v1247, %v1254
        %v1270 = vcombine.low %v1261, %v1268
        %v1272 = vunpack.c.l.s4 1966171168
        %v1273 = vunpack.c.0.s8 %v1272
        %v1274 = vlaneseq
        %v1275 = vshrl.u32 %v1274, 7
        %v1276 = vsub.s32 %v1273, %v1275
        %v1277 = vrot.slane %v1269, %v1276
        %v1279 = vunpack.c.l.s4 1966171168
        %v1280 = vunpack.c.0.s8 %v1279
        %v1281 = vlaneseq
        %v1282 = vshrl.u32 %v1281, 7
        %v1283 = vsub.s32 %v1280, %v1282
        %v1284 = vrot.slane %v1270, %v1283
        %v1285 = vcombine.low %v1277, %v1284
        %v1288 = vsel %vm298, %v1236, -inf
        %1289 = vmax.xlane.f32.xlu0 %v1288
        %v1290 = vpop.xlane.xlu0 %1289
        %v1291 = vsel %vm298, %v1285, -inf
        %1292 = vmax.xlane.f32.xlu0 %v1291
        %v1293 = vpop.xlane.xlu0 %1292
        %v1294 = vmul.f32 %v1290, 0.01
        %v1295 = vmul.f32 %v1293, 0.01
        %v1296 = vmax.f32 %v1290, %v1294
        %v1297 = vmax.f32 %v1293, %v1295
        %v1300 = vadd.s32 %v312, 4294967248
        %v1301 = vlaneseq
        %v1302 = vshrl.u32 %v1301, 7
        %v1303 = vsub.s32 %v1300, %v1302
        %v1304 = vrot.slane %v1296, %v1303
        %v1305 = vlaneseq
        %v1306 = vshrl.u32 %v1305, 7
        %v1307 = vsub.s32 %v1300, %v1306
        %v1308 = vrot.slane %v1297, %v1307
        %vm1311 = vcmask 450944
        %1312 = vst.msk [vmem:[%s153] sm:$0x1] %vm1311, %v1304
        %1313 = vst.msk [vmem:[%s153 + $0x1] sm:$0x1] %vm1311, %v1308
        %1314 = vrot.lane.b32.xlu0 %v156, 32
        %v1315 = vpop.permute.xlu0 %1314
        %1316 = vrot.lane.b32.xlu0 %v157, 32
        %v1317 = vpop.permute.xlu0 %1316
        %v1318 = vrot.slane %v1315, 1
        %v1319 = vrot.slane %v1317, 1
        %1322 = vrot.lane.b32.xlu0 %v156, 16
        %v1323 = vpop.permute.xlu0 %1322
        %1324 = vrot.lane.b32.xlu0 %v157, 16
        %v1325 = vpop.permute.xlu0 %1324
        %v1326 = vrot.slane %v1323, 1
        %v1327 = vrot.slane %v1325, 1
        %v1330 = vmax.f32 %v1318, %v1326
        %v1331 = vmax.f32 %v1319, %v1327
        %1334 = vrot.lane.b32.xlu0 %v1330, 126
        %v1335 = vpop.permute.xlu0 %1334
        %1336 = vrot.lane.b32.xlu0 %v1331, 126
        %v1337 = vpop.permute.xlu0 %1336
        %1338 = vrot.lane.b32.xlu0 %v1330, 124
        %v1339 = vpop.permute.xlu0 %1338
        %1340 = vrot.lane.b32.xlu0 %v1331, 124
        %v1341 = vpop.permute.xlu0 %1340
        %1342 = vrot.lane.b32.xlu0 %v1330, 122
        %v1343 = vpop.permute.xlu0 %1342
        %1344 = vrot.lane.b32.xlu0 %v1331, 122
        %v1345 = vpop.permute.xlu0 %1344
        %1346 = vrot.lane.b32.xlu0 %v1330, 120
        %v1347 = vpop.permute.xlu0 %1346
        %1348 = vrot.lane.b32.xlu0 %v1331, 120
        %v1349 = vpop.permute.xlu0 %1348
        %1350 = vrot.lane.b32.xlu0 %v1330, 118
        %v1351 = vpop.permute.xlu0 %1350
        %1352 = vrot.lane.b32.xlu0 %v1331, 118
        %v1353 = vpop.permute.xlu0 %1352
        %1354 = vrot.lane.b32.xlu0 %v1330, 116
        %v1355 = vpop.permute.xlu0 %1354
        %1356 = vrot.lane.b32.xlu0 %v1331, 116
        %v1357 = vpop.permute.xlu0 %1356
        %1358 = vrot.lane.b32.xlu0 %v1330, 114
        %v1359 = vpop.permute.xlu0 %1358
        %1360 = vrot.lane.b32.xlu0 %v1331, 114
        %v1361 = vpop.permute.xlu0 %1360
        %v1362 = vcombine.low %v1330, %v1335
        %v1363 = vcombine.low %v1339, %v1343
        %v1364 = vcombine.low %v1347, %v1351
        %v1365 = vcombine.low %v1355, %v1359
        %v1367 = vunpack.c.l.s4 1966171168
        %v1368 = vunpack.c.0.s8 %v1367
        %v1369 = vlaneseq
        %v1370 = vshrl.u32 %v1369, 7
        %v1371 = vsub.s32 %v1368, %v1370
        %v1372 = vrot.slane %v1362, %v1371
        %v1374 = vunpack.c.l.s4 1966171168
        %v1375 = vunpack.c.0.s8 %v1374
        %v1376 = vlaneseq
        %v1377 = vshrl.u32 %v1376, 7
        %v1378 = vsub.s32 %v1375, %v1377
        %v1379 = vrot.slane %v1363, %v1378
        %v1381 = vunpack.c.l.s4 1966171168
        %v1382 = vunpack.c.0.s8 %v1381
        %v1383 = vlaneseq
        %v1384 = vshrl.u32 %v1383, 7
        %v1385 = vsub.s32 %v1382, %v1384
        %v1386 = vrot.slane %v1364, %v1385
        %v1388 = vunpack.c.l.s4 1966171168
        %v1389 = vunpack.c.0.s8 %v1388
        %v1390 = vlaneseq
        %v1391 = vshrl.u32 %v1390, 7
        %v1392 = vsub.s32 %v1389, %v1391
        %v1393 = vrot.slane %v1365, %v1392
        %v1394 = vcombine.low %v1372, %v1379
        %v1395 = vcombine.low %v1386, %v1393
        %v1397 = vunpack.c.l.s4 1966171168
        %v1398 = vunpack.c.0.s8 %v1397
        %v1399 = vlaneseq
        %v1400 = vshrl.u32 %v1399, 7
        %v1401 = vsub.s32 %v1398, %v1400
        %v1402 = vrot.slane %v1394, %v1401
        %v1404 = vunpack.c.l.s4 1966171168
        %v1405 = vunpack.c.0.s8 %v1404
        %v1406 = vlaneseq
        %v1407 = vshrl.u32 %v1406, 7
        %v1408 = vsub.s32 %v1405, %v1407
        %v1409 = vrot.slane %v1395, %v1408
        %v1410 = vcombine.low %v1402, %v1409
        %v1411 = vcombine.low %v1331, %v1337
        %v1412 = vcombine.low %v1341, %v1345
        %v1413 = vcombine.low %v1349, %v1353
        %v1414 = vcombine.low %v1357, %v1361
        %v1416 = vunpack.c.l.s4 1966171168
        %v1417 = vunpack.c.0.s8 %v1416
        %v1418 = vlaneseq
        %v1419 = vshrl.u32 %v1418, 7
        %v1420 = vsub.s32 %v1417, %v1419
        %v1421 = vrot.slane %v1411, %v1420
        %v1423 = vunpack.c.l.s4 1966171168
        %v1424 = vunpack.c.0.s8 %v1423
        %v1425 = vlaneseq
        %v1426 = vshrl.u32 %v1425, 7
        %v1427 = vsub.s32 %v1424, %v1426
        %v1428 = vrot.slane %v1412, %v1427
        %v1430 = vunpack.c.l.s4 1966171168
        %v1431 = vunpack.c.0.s8 %v1430
        %v1432 = vlaneseq
        %v1433 = vshrl.u32 %v1432, 7
        %v1434 = vsub.s32 %v1431, %v1433
        %v1435 = vrot.slane %v1413, %v1434
        %v1437 = vunpack.c.l.s4 1966171168
        %v1438 = vunpack.c.0.s8 %v1437
        %v1439 = vlaneseq
        %v1440 = vshrl.u32 %v1439, 7
        %v1441 = vsub.s32 %v1438, %v1440
        %v1442 = vrot.slane %v1414, %v1441
        %v1443 = vcombine.low %v1421, %v1428
        %v1444 = vcombine.low %v1435, %v1442
        %v1446 = vunpack.c.l.s4 1966171168
        %v1447 = vunpack.c.0.s8 %v1446
        %v1448 = vlaneseq
        %v1449 = vshrl.u32 %v1448, 7
        %v1450 = vsub.s32 %v1447, %v1449
        %v1451 = vrot.slane %v1443, %v1450
        %v1453 = vunpack.c.l.s4 1966171168
        %v1454 = vunpack.c.0.s8 %v1453
        %v1455 = vlaneseq
        %v1456 = vshrl.u32 %v1455, 7
        %v1457 = vsub.s32 %v1454, %v1456
        %v1458 = vrot.slane %v1444, %v1457
        %v1459 = vcombine.low %v1451, %v1458
        %v1462 = vsel %vm298, %v1410, -inf
        %1463 = vmax.xlane.f32.xlu0 %v1462
        %v1464 = vpop.xlane.xlu0 %1463
        %v1465 = vsel %vm298, %v1459, -inf
        %1466 = vmax.xlane.f32.xlu0 %v1465
        %v1467 = vpop.xlane.xlu0 %1466
        %v1468 = vmul.f32 %v1464, 0.01
        %v1469 = vmul.f32 %v1467, 0.01
        %v1470 = vmax.f32 %v1464, %v1468
        %v1471 = vmax.f32 %v1467, %v1469
        %v1474 = vadd.s32 %v312, 4294967240
        %v1475 = vlaneseq
        %v1476 = vshrl.u32 %v1475, 7
        %v1477 = vsub.s32 %v1474, %v1476
        %v1478 = vrot.slane %v1470, %v1477
        %v1479 = vlaneseq
        %v1480 = vshrl.u32 %v1479, 7
        %v1481 = vsub.s32 %v1474, %v1480
        %v1482 = vrot.slane %v1471, %v1481
        %vm1485 = vcmask 516544
        %1486 = vst.msk [vmem:[%s153] sm:$0x1] %vm1485, %v1478
        %1487 = vst.msk [vmem:[%s153 + $0x1] sm:$0x1] %vm1485, %v1482
        %s1488 = sand.u32 %s68, 1
        %s1489 = scalar_lea.sflag [#allocation4], %s1488
        %s1490 = sand.u32 %s68, 1
        %s1491 = smul.addr %s1490, 2
        %s1492 = scalar_lea.vmem [#allocation5], %s1491
        // Predicated region
        $region29: #{tpu_custom_call.1} parent=23 // pred_check
          %p1493 = pneg %p78
        $region30: #{tpu_custom_call.1} parent=23 // pred_check_branch
          %1495 = sbr.rel (%p1493) target = $region32
        $region31: #{tpu_custom_call.1} parent=23 // pred_region
          %s1496 = smul.u32 2, %s22
          %s1498 = ssub.s32 32, 32
          %1499 = vsyncadd %s1489, %s1498
          %s1500 = sadd.s32 %s23, %s1496
          %s1501 = smul.addr %s1500, 16
          %s1502 = scalar_lea.hbm %s1, %s1501
          %s1503 = sshll.u32 %s1492, 4
          %s1504 = int_to_ptr.vmem [resolvable:$true] %s1503
          %1509 = dma.vmem_to_hbm [thread:$0]  %s1504, 32, %s1502, %s1489, 16, 16, 1
        $region32: #{tpu_custom_call.1} parent=23 // pred_fallthru
          _
      $region24: #{tpu_custom_call.1} parent=5 // pred_fallthru
        _
      %p1510 = scmp.le.s32.totalorder 2, %s13
      // Predicated region
      $region33: #{tpu_custom_call.1} parent=5 // pred_check
        %p1511 = pneg %p1510
      $region34: #{tpu_custom_call.1} parent=5 // pred_check_branch
        %1513 = sbr.rel (%p1511) target = $region36
      $region35: #{tpu_custom_call.1} parent=5 // pred_region
        %s1514 = ssub.s32 %s13, 2
        // Predicated region
        $region37: #{tpu_custom_call.1} parent=35 // pred_check
          %p1515 = pneg %p84
        $region38: #{tpu_custom_call.1} parent=35 // pred_check_branch
          %1517 = sbr.rel (%p1515) target = $region40
        $region39: #{tpu_custom_call.1} parent=35 // pred_region
          %s1518 = sand.u32 %s69, 1
          %s1519 = scalar_lea.sflag [#allocation4], %s1518
          %s1520 = sand.u32 %s69, 1
          %s1521 = smul.addr %s1520, 2
          %s1522 = scalar_lea.vmem [#allocation5], %s1521
          %1523 = dma.done %s1519, 32
        $region40: #{tpu_custom_call.1} parent=35 // pred_fallthru
          _
      $region36: #{tpu_custom_call.1} parent=5 // pred_fallthru
        _
    $region6: #{tpu_custom_call.1} parent=1 // loop_footer
      %s17 = sadd.s32 1, %s13
    $region7: #{tpu_custom_call.1} parent=1 // loop_footer_branch
      %12 = sbr.rel target = $region3
    $region8: #{tpu_custom_call.1} parent=1 // loop_exit
      _
    %1524 = vsyncpa [#allocation3], 1
    %s1525 = scalar_lea.sflag [#allocation3], 1
    %1526 = vsyncpa %s1525, 1
    %1527 = vsyncpa [#allocation4], 1
    %s1528 = scalar_lea.sflag [#allocation4], 1
    %1529 = vsyncpa %s1528, 1

</llo_original>
